<compile_context>
chip_gen: v5e
topology: v5e:2x2
jax: 0.10.0
libtpu: 0.0.40
codegen_flags: <defaults>
</compile_context>

<pallas_src>
import math
import functools

import jax
import jax.numpy as jnp
from jax import lax
from jax.experimental import pallas as pl
from jax.experimental.pallas import tpu as pltpu


# ------------------------------ helpers ------------------------------------ #

def _pick_tile(dim, preferred, unit):
    """Largest multiple of `unit` that is <= preferred and divides `dim`;
    falls back to the full dim (always legal for BlockSpec)."""
    if dim <= preferred:
        return dim
    t = (preferred // unit) * unit
    while t >= unit:
        if dim % t == 0:
            return t
        t -= unit
    return dim


# ------------------------- tiled linear (x @ W + b) ------------------------- #

def _linear_kernel(x_ref, w_ref, b_ref, o_ref, acc_ref):
    # x: (tm, tk), w: (tk, tn) already transposed at init (no in-kernel .T),
    # b: (1, tn), o: (tm, tn).  k grid axis is the reduction axis.
    @pl.when(pl.program_id(2) == 0)
    def _():
        acc_ref[...] = jnp.zeros_like(acc_ref)

    acc_ref[...] += jnp.dot(x_ref[...], w_ref[...],
                            preferred_element_type=jnp.float32)

    @pl.when(pl.program_id(2) == pl.num_programs(2) - 1)
    def _():
        o_ref[...] = (acc_ref[...] + b_ref[...]).astype(o_ref.dtype)


def _linear(x, w_t, b, *, tm=256, tn=256, tk=512):
    """y = x @ w_t + b;  x: (M, K), w_t: (K, N) pre-transposed, b: (N,)."""
    M, K = x.shape
    N = w_t.shape[1]
    tm = _pick_tile(M, tm, 8)
    tn = _pick_tile(N, tn, 128)
    tk = _pick_tile(K, tk, 128)
    grid = (M // tm, N // tn, K // tk)
    return pl.pallas_call(
        _linear_kernel,
        out_shape=jax.ShapeDtypeStruct((M, N), x.dtype),
        grid_spec=pltpu.PrefetchScalarGridSpec(
            num_scalar_prefetch=0,
            grid=grid,
            in_specs=[
                pl.BlockSpec((tm, tk), lambda i, j, k: (i, k)),
                pl.BlockSpec((tk, tn), lambda i, j, k: (k, j)),
                pl.BlockSpec((1, tn), lambda i, j, k: (0, j)),
            ],
            out_specs=pl.BlockSpec((tm, tn), lambda i, j, k: (i, j)),
            scratch_shapes=[pltpu.VMEM((tm, tn), jnp.float32)],
        ),
        compiler_params=pltpu.CompilerParams(
            dimension_semantics=("parallel", "parallel", "arbitrary"),
            vmem_limit_bytes=32 * 1024 * 1024,
        ),
    )(x, w_t, b.reshape(1, N))


# ----------------------------- attention core ------------------------------ #

def _attn_kernel(*refs, n_heads, head_dim, has_mask):
    # Blocks keep hid_dim = n_heads*head_dim as the (lane-dense) last axis;
    # heads are sliced inside the kernel.
    if has_mask:
        q_ref, k_ref, v_ref, mask_ref, o_ref, attn_ref = refs
    else:
        q_ref, k_ref, v_ref, o_ref, attn_ref = refs
        mask_ref = None

    contract_last = (((1,), (1,)), ((), ()))  # QK^T without an explicit .T
    for h in range(n_heads):
        lo, hi = h * head_dim, (h + 1) * head_dim
        qh = q_ref[:, lo:hi]          # (tq, D)   scale pre-folded into W_q
        kh = k_ref[:, lo:hi]          # (Lk, D)
        vh = v_ref[:, lo:hi]          # (Lk, D)

        energy = lax.dot_general(qh, kh, contract_last,
                                 preferred_element_type=jnp.float32)
        if mask_ref is not None:
            energy = jnp.where(mask_ref[h] == 0, -1e10, energy)

        # numerically-stable softmax along the key axis
        m = jnp.max(energy, axis=-1, keepdims=True)
        p = jnp.exp(energy - m)
        attn = p * pl.reciprocal(jnp.sum(p, axis=-1, keepdims=True), approx=True)
        attn_ref[h] = attn.astype(attn_ref.dtype)

        # TODO(synk): dropout on `attn` omitted (inference / eval-mode identity).
        ctx = jnp.dot(attn.astype(vh.dtype), vh,
                      preferred_element_type=jnp.float32)
        o_ref[:, lo:hi] = ctx.astype(o_ref.dtype)


def _mha_core(q, k, v, n_heads, mask=None, *, tq=256):
    """q: (B, Lq, hid), k/v: (B, Lk, hid) -> (ctx (B,Lq,hid), attn (B,H,Lq,Lk))."""
    B, Lq, hid = q.shape
    Lk = k.shape[1]
    head_dim = hid // n_heads
    tq = _pick_tile(Lq, tq, 8)
    grid = (B, Lq // tq)

    q_spec = pl.BlockSpec((None, tq, hid), lambda b, qi: (b, qi, 0))
    kv_spec = pl.BlockSpec((None, Lk, hid), lambda b, qi: (b, 0, 0))
    attn_spec = pl.BlockSpec((None, n_heads, tq, Lk), lambda b, qi: (b, 0, qi, 0))

    in_specs = [q_spec, kv_spec, kv_spec]
    inputs = [q, k, v]
    if mask is not None:
        mask_b = jnp.broadcast_to(mask, (B, n_heads, Lq, Lk)).astype(jnp.int32)
        in_specs.append(pl.BlockSpec((None, n_heads, tq, Lk),
                                     lambda b, qi: (b, 0, qi, 0)))
        inputs.append(mask_b)

    kernel = functools.partial(_attn_kernel, n_heads=n_heads,
                               head_dim=head_dim, has_mask=mask is not None)
    ctx, attn = pl.pallas_call(
        kernel,
        out_shape=(
            jax.ShapeDtypeStruct((B, Lq, hid), q.dtype),
            jax.ShapeDtypeStruct((B, n_heads, Lq, Lk), jnp.float32),
        ),
        grid=grid,
        in_specs=in_specs,
        out_specs=(q_spec, attn_spec),
        compiler_params=pltpu.CompilerParams(
            dimension_semantics=("parallel", "parallel"),
            vmem_limit_bytes=32 * 1024 * 1024,
        ),
    )(*inputs)
    return ctx, attn


# --------------------------- Module-level wrapper --------------------------- #

class MultiHeadAttentionLayer:
    """JAX/Pallas port of the PyTorch MultiHeadAttentionLayer forward pass."""

    def __init__(self, hid_dim, n_heads, dropout, key):
        assert hid_dim % n_heads == 0
        self.hid_dim = hid_dim
        self.n_heads = n_heads
        self.head_dim = hid_dim // n_heads
        self.scale = math.sqrt(float(self.head_dim))
        self.dropout = dropout  # identity at inference

        # PyTorch nn.Linear default init: U(-1/sqrt(in), 1/sqrt(in)), W: (out, in)
        bound = 1.0 / math.sqrt(hid_dim)
        keys = jax.random.split(key, 8)

        def _w(kk):
            return jax.random.uniform(kk, (hid_dim, hid_dim), jnp.float32, -bound, bound)

        def _b(kk):
            return jax.random.uniform(kk, (hid_dim,), jnp.float32, -bound, bound)

        self.Wq, self.bq = _w(keys[0]), _b(keys[1])
        self.Wk, self.bk = _w(keys[2]), _b(keys[3])
        self.Wv, self.bv = _w(keys[4]), _b(keys[5])
        self.Wo, self.bo = _w(keys[6]), _b(keys[7])

        # Kernel-side parameters: pre-transposed to (in, out) so the matmul
        # kernel never transposes, and 1/sqrt(head_dim) folded into the Q
        # projection so the attention kernel skips the (L,L) divide.
        inv_scale = 1.0 / self.scale
        self.Wq_t = self.Wq.T * inv_scale
        self.bq_s = self.bq * inv_scale
        self.Wk_t = self.Wk.T
        self.Wv_t = self.Wv.T
        self.Wo_t = self.Wo.T
        # Fused projections (read the activations from HBM once).
        self.W_qkv_t = jnp.concatenate([self.Wq_t, self.Wk_t, self.Wv_t], axis=1)
        self.b_qkv = jnp.concatenate([self.bq_s, self.bk, self.bv])
        self.W_kv_t = jnp.concatenate([self.Wk_t, self.Wv_t], axis=1)
        self.b_kv = jnp.concatenate([self.bk, self.bv])

    def __call__(self, query, key, value, mask=None):
        # query: [B, Lq, hid], key/value: [B, Lk, hid]
        B, Lq, _ = query.shape
        Lk = key.shape[1]
        hid = self.hid_dim

        q2d = query.reshape(B * Lq, hid)
        if (query is key) and (key is value):
            # Self-attention: one fused QKV matmul.
            qkv = _linear(q2d, self.W_qkv_t, self.b_qkv)
            Q, K, V = qkv[:, :hid], qkv[:, hid:2 * hid], qkv[:, 2 * hid:]
        else:
            Q = _linear(q2d, self.Wq_t, self.bq_s)
            k2d = key.reshape(B * Lk, hid)
            if key is value:
                kv = _linear(k2d, self.W_kv_t, self.b_kv)
                K, V = kv[:, :hid], kv[:, hid:]
            else:
                K = _linear(k2d, self.Wk_t, self.bk)
                V = _linear(value.reshape(B * Lk, hid), self.Wv_t, self.bv)

        Q = Q.reshape(B, Lq, hid)
        K = K.reshape(B, Lk, hid)
        V = V.reshape(B, Lk, hid)

        # No [B,H,L,D] transpose round-trips: heads are split inside the kernel.
        ctx, attention = _mha_core(Q, K, V, self.n_heads, mask=mask)

        out = _linear(ctx.reshape(B * Lq, hid), self.Wo_t, self.bo)
        return out.reshape(B, Lq, hid), attention


# --------------------------------- Driver ----------------------------------- #

def _reference(layer, q, k, v, mask=None):
    """Pure-JAX reference matching the PyTorch module."""
    B, Lq, _ = q.shape
    Lk = k.shape[1]
    H, D = layer.n_heads, layer.head_dim
    Q = q @ layer.Wq.T + layer.bq
    K = k @ layer.Wk.T + layer.bk
    V = v @ layer.Wv.T + layer.bv
    Qh = Q.reshape(B, Lq, H, D).transpose(0, 2, 1, 3)
    Kh = K.reshape(B, Lk, H, D).transpose(0, 2, 1, 3)
    Vh = V.reshape(B, Lk, H, D).transpose(0, 2, 1, 3)
    energy = jnp.einsum("bhqd,bhkd->bhqk", Qh, Kh) / layer.scale
    if mask is not None:
        energy = jnp.where(jnp.broadcast_to(mask, energy.shape) == 0, -1e10, energy)
    attn = jax.nn.softmax(energy, axis=-1)
    ctx = jnp.einsum("bhqk,bhkd->bhqd", attn, Vh)
    x = ctx.transpose(0, 2, 1, 3).reshape(B, Lq, layer.hid_dim)
    x = x @ layer.Wo.T + layer.bo
    return x, attn


if __name__ == "__main__":
    B, L, HID, NHEADS = 2, 8, 32, 4
    root = jax.random.PRNGKey(0)
    kp, kx, kk, kv = jax.random.split(root, 4)

    layer = MultiHeadAttentionLayer(HID, NHEADS, dropout=0.1, key=kp)

    # --- self-attention, no mask (exercises the fused-QKV path) ------------ #
    x = jax.random.normal(kx, (B, L, HID), jnp.float32)
    out, attn = layer(x, x, x)
    out = jax.block_until_ready(out)
    attn = jax.block_until_ready(attn)
    ref_out, ref_attn = _reference(layer, x, x, x)
    assert out.shape == (B, L, HID)
    assert attn.shape == (B, NHEADS, L, L)
    assert jnp.allclose(out, ref_out, atol=2e-3, rtol=2e-3)
    assert jnp.allclose(attn, ref_attn, atol=2e-3, rtol=2e-3)

    # --- cross-attention with a (causal) mask ------------------------------ #
    key_in = jax.random.normal(kk, (B, L, HID), jnp.float32)
    value_in = jax.random.normal(kv, (B, L, HID), jnp.float32)
    mask = jnp.tril(jnp.ones((L, L), jnp.int32))[None, None]  # (1,1,L,L)
    out2, attn2 = layer(x, key_in, value_in, mask=mask)
    out2 = jax.block_until_ready(out2)
    attn2 = jax.block_until_ready(attn2)
    ref_out2, ref_attn2 = _reference(layer, x, key_in, value_in, mask=mask)
    assert jnp.allclose(out2, ref_out2, atol=2e-3, rtol=2e-3)
    assert jnp.allclose(attn2, ref_attn2, atol=2e-3, rtol=2e-3)

    print("KERNEL_OK")
</pallas_src>

<mosaic_0001>
module attributes {stable_mosaic.version = 11 : i64} {
  func.func @_linear_kernel(%arg0: i32, %arg1: i32, %arg2: i32, %arg3: memref<16x32xf32, #tpu.memory_space<vmem>>, %arg4: memref<32x96xf32, #tpu.memory_space<vmem>>, %arg5: memref<1x96xf32, #tpu.memory_space<vmem>>, %arg6: memref<16x96xf32, #tpu.memory_space<vmem>>, %arg7: memref<16x96xf32, #tpu.memory_space<vmem>>) attributes {dimension_semantics = [#tpu.dimension_semantics<parallel>, #tpu.dimension_semantics<parallel>, #tpu.dimension_semantics<arbitrary>], iteration_bounds = array<i64: 1, 1, 1>, scalar_prefetch = 0 : i64, scratch_operands = 1 : i64, tpu.core_type = #tpu.core_type<tc>, window_params = [{transform_indices = @transform_0, window_bounds = array<i64: 16, 32>}, {transform_indices = @transform_1, window_bounds = array<i64: 32, 96>}, {transform_indices = @transform_2, window_bounds = array<i64: 1, 96>}, {transform_indices = @transform_3, window_bounds = array<i64: 16, 96>}]} {
    %c0_i32 = arith.constant 0 : i32
    %0 = arith.cmpi eq, %arg2, %c0_i32 : i32
    %1 = arith.extui %0 : i1 to i32
    %c0_i32_0 = arith.constant 0 : i32
    %2 = arith.cmpi ne, %1, %c0_i32_0 : i32
    scf.if %2 {
      %cst_10 = arith.constant 0.000000e+00 : f32
      %12 = vector.broadcast %cst_10 : f32 to vector<16x96xf32>
      %c0_11 = arith.constant 0 : index
      %c0_12 = arith.constant 0 : index
      %13 = vector.load %arg7[%c0_11, %c0_12] : memref<16x96xf32, #tpu.memory_space<vmem>>, vector<16x96xf32>
      tpu.vector_store %arg7[%c0_11, %c0_12], %12 {strides = array<i32>} : memref<16x96xf32, #tpu.memory_space<vmem>>, vector<16x96xf32>,
    } else {
    }
    %c0 = arith.constant 0 : index
    %c0_1 = arith.constant 0 : index
    %3 = vector.load %arg7[%c0, %c0_1] : memref<16x96xf32, #tpu.memory_space<vmem>>, vector<16x96xf32>
    %c0_2 = arith.constant 0 : index
    %c0_3 = arith.constant 0 : index
    %4 = vector.load %arg3[%c0_2, %c0_3] : memref<16x32xf32, #tpu.memory_space<vmem>>, vector<16x32xf32>
    %c0_4 = arith.constant 0 : index
    %c0_5 = arith.constant 0 : index
    %5 = vector.load %arg4[%c0_4, %c0_5] : memref<32x96xf32, #tpu.memory_space<vmem>>, vector<32x96xf32>
    %cst = arith.constant dense<0.000000e+00> : vector<16x96xf32>
    %6 = tpu.matmul %4, %5, %cst {dimension_numbers = #tpu.dot_dimension_numbers<[1], [0], [0], [1], [0, 0, 1, 1], [], []>} : vector<16x32xf32>, vector<32x96xf32>, vector<16x96xf32> -> vector<16x96xf32>
    %7 = arith.addf %3, %6 : vector<16x96xf32>
    %c0_6 = arith.constant 0 : index
    %c0_7 = arith.constant 0 : index
    %8 = vector.load %arg7[%c0_6, %c0_7] : memref<16x96xf32, #tpu.memory_space<vmem>>, vector<16x96xf32>
    tpu.vector_store %arg7[%c0_6, %c0_7], %7 {strides = array<i32>} : memref<16x96xf32, #tpu.memory_space<vmem>>, vector<16x96xf32>,
    %c0_i32_8 = arith.constant 0 : i32
    %9 = arith.cmpi eq, %arg2, %c0_i32_8 : i32
    %10 = arith.extui %9 : i1 to i32
    %c0_i32_9 = arith.constant 0 : i32
    %11 = arith.cmpi ne, %10, %c0_i32_9 : i32
    scf.if %11 {
      %c0_10 = arith.constant 0 : index
      %c0_11 = arith.constant 0 : index
      %12 = vector.load %arg7[%c0_10, %c0_11] : memref<16x96xf32, #tpu.memory_space<vmem>>, vector<16x96xf32>
      %c0_12 = arith.constant 0 : index
      %c0_13 = arith.constant 0 : index
      %13 = vector.load %arg5[%c0_12, %c0_13] : memref<1x96xf32, #tpu.memory_space<vmem>>, vector<1x96xf32>
      %14 = vector.broadcast %13 : vector<1x96xf32> to vector<16x96xf32>
      %15 = arith.addf %12, %14 : vector<16x96xf32>
      %c0_14 = arith.constant 0 : index
      %c0_15 = arith.constant 0 : index
      %16 = vector.load %arg6[%c0_14, %c0_15] : memref<16x96xf32, #tpu.memory_space<vmem>>, vector<16x96xf32>
      tpu.vector_store %arg6[%c0_14, %c0_15], %15 {strides = array<i32>} : memref<16x96xf32, #tpu.memory_space<vmem>>, vector<16x96xf32>,
    } else {
    }
    return
  }
  func.func @transform_0(%arg0: i32, %arg1: i32, %arg2: i32) -> (i32, i32) {
    %c0_i32 = arith.constant 0 : i32
    return %arg0, %arg2 : i32, i32
  }
  func.func @transform_1(%arg0: i32, %arg1: i32, %arg2: i32) -> (i32, i32) {
    %c0_i32 = arith.constant 0 : i32
    return %arg2, %arg1 : i32, i32
  }
  func.func @transform_2(%arg0: i32, %arg1: i32, %arg2: i32) -> (i32, i32) {
    %c0_i32 = arith.constant 0 : i32
    %c0_i32_0 = arith.constant 0 : i32
    return %c0_i32, %arg1 : i32, i32
  }
  func.func @transform_3(%arg0: i32, %arg1: i32, %arg2: i32) -> (i32, i32) {
    %c0_i32 = arith.constant 0 : i32
    return %arg0, %arg1 : i32, i32
  }
}

</mosaic_0001>

<llo_original>
// kernel: tpu_custom_call.1
$region0: #{tpu_custom_call.1}
  #allocation0 [shape = 'u32[]', space=smem, size = 0x4, offset = 0x4, fixed_abs, tag = 'smem constant byte address 0x4 - core index']
  #allocation1 [shape = 'u32[72,128]{1,0:T(1,128)}', space=vmem, size = 0x9000, scoped, tag = 'internal scratch']
  #allocation2 [shape = 'f32[16,96]{1,0:T(8,128)}', space=vmem, size = 0x2000, scoped, tag = 'scratch operand']
  %s0 = inlined_call_operand.hbm [shape: f32[16,32], index: 0, kind: input, shape index: {}]
  %s1 = inlined_call_operand.hbm [shape: f32[32,96], index: 1, kind: input, shape index: {}]
  %s2 = inlined_call_operand.vmem [shape: f32[1,96], index: 2, kind: input, shape index: {}]
  %s3 = inlined_call_operand.hbm [shape: f32[16,96], index: 3, kind: output, shape index: {}]
  %s4 = sld [smem:[#allocation0]]
  $region38: #{tpu_custom_call.1} parent=0
    _
  %s6 = ssub.s32 1, %s4
  %s7 = scalar_select 0, %s6, %s4
  $region1: #{tpu_custom_call.1} parent=0
    #allocation3 [shape = 'u8[8192]{0}', space=vmem, size = 0x2000, scoped, tag = 'input window, operand 0, single buffered']
    #allocation4 [shape = 's32[1]{0}', space=sflag, size = 0x4, scoped, tag = 'scoped memory for tpu_custom_call.1']
    #allocation5 [shape = 's32[1]{0}', space=sflag, size = 0x4, scoped, tag = 'scoped memory for tpu_custom_call.1']
    #allocation6 [shape = 'u8[16384]{0}', space=vmem, size = 0x4000, scoped, tag = 'input window, operand 1, single buffered']
    #allocation7 [shape = 's32[1]{0}', space=sflag, size = 0x4, scoped, tag = 'scoped memory for tpu_custom_call.1']
    #allocation8 [shape = 'u8[8192]{0}', space=vmem, size = 0x2000, scoped, tag = 'output window, operand 0, single buffered']
    %8 = vsyncpa [#allocation4], 0
    %9 = vsyncpa [#allocation7], 0
    %10 = vsyncpa [#allocation5], 0
    // Predicated region
    $region2: #{tpu_custom_call.1} parent=1 // pred_check
      _
    $region3: #{tpu_custom_call.1} parent=1 // pred_check_branch
      %12 = sbr.rel (0) target = $region5
    $region4: #{tpu_custom_call.1} parent=1 // pred_region
      %14 = vsyncadd [#allocation4], 0
      %s15 = sshll.u32 %s0, 4
      %s16 = int_to_ptr.hbm [resolvable:$true] %s15
      %s17 = sshll.u32 [#allocation3], 4
      %s18 = int_to_ptr.vmem [resolvable:$true] %s17
      %23 = dma.hbm_to_vmem [thread:$0]  %s16, 256, %s18, [#allocation4], 128, 128, 8
    $region5: #{tpu_custom_call.1} parent=1 // pred_fallthru
      _
    // Predicated region
    $region6: #{tpu_custom_call.1} parent=1 // pred_check
      _
    $region7: #{tpu_custom_call.1} parent=1 // pred_check_branch
      %25 = sbr.rel (0) target = $region9
    $region8: #{tpu_custom_call.1} parent=1 // pred_region
      %27 = vsyncadd [#allocation7], 0
      %s28 = sshll.u32 %s1, 4
      %s29 = int_to_ptr.hbm [resolvable:$true] %s28
      %s30 = sshll.u32 [#allocation6], 4
      %s31 = int_to_ptr.vmem [resolvable:$true] %s30
      %36 = dma.hbm_to_vmem [thread:$0]  %s29, 512, %s31, [#allocation7], 128, 128, 8
    $region9: #{tpu_custom_call.1} parent=1 // pred_fallthru
      _
    // Predicated region
    $region10: #{tpu_custom_call.1} parent=1 // pred_check
      _
    $region11: #{tpu_custom_call.1} parent=1 // pred_check_branch
      %38 = sbr.rel (0) target = $region13
    $region12: #{tpu_custom_call.1} parent=1 // pred_region
      _
    $region13: #{tpu_custom_call.1} parent=1 // pred_fallthru
      _
    // Predicated region
    $region14: #{tpu_custom_call.1} parent=1 // pred_check
      _
    $region15: #{tpu_custom_call.1} parent=1 // pred_check_branch
      %40 = sbr.rel (0) target = $region17
    $region16: #{tpu_custom_call.1} parent=1 // pred_region
      %42 = dma.done [#allocation4], 256
    $region17: #{tpu_custom_call.1} parent=1 // pred_fallthru
      _
    // Predicated region
    $region18: #{tpu_custom_call.1} parent=1 // pred_check
      _
    $region19: #{tpu_custom_call.1} parent=1 // pred_check_branch
      %44 = sbr.rel (0) target = $region21
    $region20: #{tpu_custom_call.1} parent=1 // pred_region
      %46 = dma.done [#allocation7], 512
    $region21: #{tpu_custom_call.1} parent=1 // pred_fallthru
      _
    %p47 = scmp.eq.s32.totalorder 0, 0
    // Predicated region
    $region22: #{tpu_custom_call.1} parent=1 // pred_check
      %p48 = pneg %p47
    $region23: #{tpu_custom_call.1} parent=1 // pred_check_branch
      %50 = sbr.rel (%p48) target = $region25
    $region24: #{tpu_custom_call.1} parent=1 // pred_region
      %vm51 = vcmask 785408
      %52 = vst.msk [vmem:[#allocation2] sm:$0xff] %vm51, 0.0
      %53 = vst.msk [vmem:[#allocation2 + $0x8] sm:$0xff] %vm51, 0.0
    $region25: #{tpu_custom_call.1} parent=1 // pred_fallthru
      _
    %v54 = vld [vmem:[#allocation2] sm:$0xff]
    %v55 = vld [vmem:[#allocation2 + $0x8] sm:$0xff]
    %v56 = vld [vmem:[#allocation3] sm:$0xff]
    %v57 = vld [vmem:[#allocation3 + $0x8] sm:$0xff]
    %v58 = vld [vmem:[#allocation6] sm:$0xff]
    %v59 = vld [vmem:[#allocation6 + $0x8] sm:$0xff]
    %v60 = vld [vmem:[#allocation6 + $0x10] sm:$0xff]
    %v61 = vld [vmem:[#allocation6 + $0x18] sm:$0xff]
    %vm62 = vcmask 261120
    %v64 = vsel %vm62, %v56, 0
    %v67 = vsel %vm62, %v57, 0
    %69 = vmatpush.msra.mxu0 0.0
    %70 = vmatpush.msra.mxu0 0.0
    %71 = vmatpush.msra.mxu0 0.0
    %72 = vmatpush.msra.mxu0 0.0
    %73 = vmatpush.msra.mxu0 0.0
    %74 = vmatpush.msra.mxu0 0.0
    %75 = vmatpush.msra.mxu0 0.0
    %76 = vmatpush.msra.mxu0 0.0
    %77 = vmatpush.msra.mxu0 0.0
    %78 = vmatpush.msra.mxu0 0.0
    %79 = vmatpush.msra.mxu0 0.0
    %80 = vmatpush.msra.mxu0 0.0
    %81 = vmatpush.msra.mxu0 %v61
    %82 = vmatpush.msra.mxu0 %v60
    %83 = vmatpush.msra.mxu0 %v59
    %84 = vmatpush.msra.mxu0 %v58
    %85 = vmatmul.f32.gmra.mxu0 %v64
    %v86 = vpop.f32.mrf.mxu0
    %v87 = vadd.f32 0.0, %v86
    %88 = vmatmul.f32.gmra.mxu0 %v67
    %v89 = vpop.f32.mrf.mxu0
    %v90 = vadd.f32 0.0, %v89
    %91 = vdwg.mxu0
    %v92 = vadd.f32 %v54, %v87
    %v93 = vadd.f32 %v55, %v90
    %vm94 = vcmask 785408
    %95 = vst.msk [vmem:[#allocation2] sm:$0xff] %vm94, %v92
    %96 = vst.msk [vmem:[#allocation2 + $0x8] sm:$0xff] %vm94, %v93
    // Predicated region
    $region26: #{tpu_custom_call.1} parent=1 // pred_check
      %p97 = pneg %p47
    $region27: #{tpu_custom_call.1} parent=1 // pred_check_branch
      %99 = sbr.rel (%p97) target = $region29
    $region28: #{tpu_custom_call.1} parent=1 // pred_region
      %v100 = vld [vmem:[#allocation2] sm:$0xff]
      %v101 = vld [vmem:[#allocation2 + $0x8] sm:$0xff]
      %v102 = vld [vmem:[%s2] sm:$0x1]
      %v104 = vperm.slane %v102, 0
      %v106 = vadd.f32 %v100, %v104
      %v107 = vadd.f32 %v101, %v104
      %108 = vst.msk [vmem:[#allocation8] sm:$0xff] %vm94, %v106
      %109 = vst.msk [vmem:[#allocation8 + $0x8] sm:$0xff] %vm94, %v107
    $region29: #{tpu_custom_call.1} parent=1 // pred_fallthru
      _
    // Predicated region
    $region30: #{tpu_custom_call.1} parent=1 // pred_check
      _
    $region31: #{tpu_custom_call.1} parent=1 // pred_check_branch
      %111 = sbr.rel (0) target = $region33
    $region32: #{tpu_custom_call.1} parent=1 // pred_region
      %113 = vsyncadd [#allocation5], 0
      %s114 = sshll.u32 [#allocation8], 4
      %s115 = int_to_ptr.vmem [resolvable:$true] %s114
      %s116 = sshll.u32 %s3, 4
      %s117 = int_to_ptr.hbm [resolvable:$true] %s116
      %122 = dma.vmem_to_hbm [thread:$0]  %s115, 256, %s117, [#allocation5], 128, 128, 8
    $region33: #{tpu_custom_call.1} parent=1 // pred_fallthru
      _
    // Predicated region
    $region34: #{tpu_custom_call.1} parent=1 // pred_check
      _
    $region35: #{tpu_custom_call.1} parent=1 // pred_check_branch
      %124 = sbr.rel (0) target = $region37
    $region36: #{tpu_custom_call.1} parent=1 // pred_region
      %126 = dma.done [#allocation5], 256
    $region37: #{tpu_custom_call.1} parent=1 // pred_fallthru
      _
    %127 = vsyncpa [#allocation4], 1
    %128 = vsyncpa [#allocation7], 1
    %129 = vsyncpa [#allocation5], 1

</llo_original>
